<compile_context>
chip_gen: v7x
topology: tpu7x:2x2x1
jax: 0.10.0
libtpu: 0.0.40
codegen_flags: <defaults>
</compile_context>

<pallas_src>
import jax
import jax.numpy as jnp
from jax.experimental import pallas as pl
from jax.experimental.pallas import tpu as pltpu


def _attention_head_kernel(x_ref, ww_ref, wb_ref, vw_ref, vb_ref, o_ref):
    """x:(B,S,IN)  ww:(IN,HID)  wb:(1,HID)  vw:(HID,OUT)  vb:(1,OUT)  o:(B,IN)."""
    B, S, IN = x_ref.shape
    OUT = vw_ref.shape[1]

    x = x_ref[...]                                   # (B, S, IN)

    # Linear W + tanh as one lane-dense (B*S, IN) @ (IN, HID) MXU matmul.
    x2 = x.reshape(B * S, IN)
    h = jnp.tanh(
        jnp.dot(x2, ww_ref[...], preferred_element_type=jnp.float32)
        + wb_ref[...])                               # (B*S, HID)

    # Linear V: (B*S, HID) @ (HID, OUT).
    s2 = jnp.dot(h, vw_ref[...], preferred_element_type=jnp.float32) + vb_ref[...]
    s = s2.reshape(B, S, OUT)                        # (B, S, OUT)

    # Softmax over the sequence axis (dim=1 in the PyTorch module).
    m = jnp.max(s, axis=1, keepdims=True)            # (B, 1, OUT)
    e = jnp.exp(s - m)
    a = e / jnp.sum(e, axis=1, keepdims=True)        # (B, S, OUT)

    # Attention-weighted sum over the sequence axis (broadcast over IN).
    o_ref[...] = jnp.sum(a * x.astype(jnp.float32), axis=1).astype(o_ref.dtype)


def attention_head(x, w_w, w_b, v_w, v_b):
    """x: (B,S,IN); w_w: (IN,HID); w_b: (HID,); v_w: (HID,OUT); v_b: (OUT,).

    Weights are stored (in, out) -- i.e. already-transposed nn.Linear weights.
    """
    B, S, IN = x.shape
    HID = w_w.shape[1]
    OUT = v_w.shape[1]

    return pl.pallas_call(
        _attention_head_kernel,
        out_shape=jax.ShapeDtypeStruct((B, IN), x.dtype),
        in_specs=[pl.BlockSpec(memory_space=pltpu.MemorySpace.VMEM)] * 5,
        out_specs=pl.BlockSpec(memory_space=pltpu.MemorySpace.VMEM),
    )(x, w_w, w_b.reshape(1, HID), v_w, v_b.reshape(1, OUT))


def _reference(x, w_w, w_b, v_w, v_b):
    """Pure-JAX reference matching the PyTorch forward."""
    hp = jax.lax.Precision.HIGHEST
    h = jnp.tanh(jnp.dot(x, w_w, precision=hp) + w_b[None, None, :])
    s = jnp.dot(h, v_w, precision=hp) + v_b[None, None, :]
    a = jax.nn.softmax(s, axis=1)
    return jnp.sum(a * x, axis=1)


if __name__ == "__main__":
    # Small, deterministic shapes consistent with the module
    # (attention pooling head: out_features = 1).
    B, S, IN, HID, OUT = 4, 16, 128, 128, 1

    key = jax.random.PRNGKey(0)
    kx, kw1, kb1, kw2, kb2 = jax.random.split(key, 5)

    x = jax.random.normal(kx, (B, S, IN), dtype=jnp.float32)

    # nn.Linear-style uniform init, stored as (in, out).
    bound_w = 1.0 / (IN ** 0.5)
    w_w = jax.random.uniform(kw1, (IN, HID), minval=-bound_w, maxval=bound_w,
                             dtype=jnp.float32)
    w_b = jax.random.uniform(kb1, (HID,), minval=-bound_w, maxval=bound_w,
                             dtype=jnp.float32)
    bound_v = 1.0 / (HID ** 0.5)
    v_w = jax.random.uniform(kw2, (HID, OUT), minval=-bound_v, maxval=bound_v,
                             dtype=jnp.float32)
    v_b = jax.random.uniform(kb2, (OUT,), minval=-bound_v, maxval=bound_v,
                             dtype=jnp.float32)

    out = attention_head(x, w_w, w_b, v_w, v_b)
    out = jax.block_until_ready(out)

    ref = _reference(x, w_w, w_b, v_w, v_b)
    assert out.shape == (B, IN), out.shape
    assert jnp.allclose(out, ref, atol=1e-4, rtol=1e-4), (
        float(jnp.max(jnp.abs(out - ref))))

    print("KERNEL_OK")
</pallas_src>

<mosaic_0001>
module attributes {stable_mosaic.version = 11 : i64} {
  func.func @_attention_head_kernel(%arg0: memref<4x16x128xf32, #tpu.memory_space<vmem>>, %arg1: memref<128x128xf32, #tpu.memory_space<vmem>>, %arg2: memref<1x128xf32, #tpu.memory_space<vmem>>, %arg3: memref<128x1xf32, #tpu.memory_space<vmem>>, %arg4: memref<1x1xf32, #tpu.memory_space<vmem>>, %arg5: memref<4x128xf32, #tpu.memory_space<vmem>>) attributes {dimension_semantics = [], scalar_prefetch = 0 : i64, scratch_operands = 0 : i64, tpu.core_type = #tpu.core_type<tc>} {
    %c0 = arith.constant 0 : index
    %c0_0 = arith.constant 0 : index
    %c0_1 = arith.constant 0 : index
    %0 = vector.load %arg0[%c0, %c0_0, %c0_1] : memref<4x16x128xf32, #tpu.memory_space<vmem>>, vector<4x16x128xf32>
    %1 = vector.shape_cast %0 : vector<4x16x128xf32> to vector<64x128xf32>
    %c0_2 = arith.constant 0 : index
    %c0_3 = arith.constant 0 : index
    %2 = vector.load %arg1[%c0_2, %c0_3] : memref<128x128xf32, #tpu.memory_space<vmem>>, vector<128x128xf32>
    %cst = arith.constant dense<0.000000e+00> : vector<64x128xf32>
    %3 = tpu.matmul %1, %2, %cst {dimension_numbers = #tpu.dot_dimension_numbers<[1], [0], [0], [1], [0, 0, 1, 1], [], []>} : vector<64x128xf32>, vector<128x128xf32>, vector<64x128xf32> -> vector<64x128xf32>
    %c0_4 = arith.constant 0 : index
    %c0_5 = arith.constant 0 : index
    %4 = vector.load %arg2[%c0_4, %c0_5] : memref<1x128xf32, #tpu.memory_space<vmem>>, vector<1x128xf32>
    %5 = vector.broadcast %4 : vector<1x128xf32> to vector<64x128xf32>
    %6 = arith.addf %3, %5 : vector<64x128xf32>
    %7 = math.tanh %6 : vector<64x128xf32>
    %c0_6 = arith.constant 0 : index
    %c0_7 = arith.constant 0 : index
    %8 = vector.load %arg3[%c0_6, %c0_7] : memref<128x1xf32, #tpu.memory_space<vmem>>, vector<128x1xf32>
    %cst_8 = arith.constant dense<0.000000e+00> : vector<64x1xf32>
    %9 = tpu.matmul %7, %8, %cst_8 {dimension_numbers = #tpu.dot_dimension_numbers<[1], [0], [0], [1], [0, 0, 1, 1], [], []>} : vector<64x128xf32>, vector<128x1xf32>, vector<64x1xf32> -> vector<64x1xf32>
    %c0_9 = arith.constant 0 : index
    %c0_10 = arith.constant 0 : index
    %10 = vector.load %arg4[%c0_9, %c0_10] : memref<1x1xf32, #tpu.memory_space<vmem>>, vector<1x1xf32>
    %11 = vector.broadcast %10 : vector<1x1xf32> to vector<64x1xf32>
    %12 = arith.addf %9, %11 : vector<64x1xf32>
    %13 = vector.shape_cast %12 : vector<64x1xf32> to vector<4x16x1xf32>
    %cst_11 = arith.constant dense<0xFF800000> : vector<4x1xf32>
    %14 = vector.multi_reduction <maximumf>, %13, %cst_11 [1] : vector<4x16x1xf32> to vector<4x1xf32>
    %15 = vector.shape_cast %14 : vector<4x1xf32> to vector<4x1x1xf32>
    %16 = vector.broadcast %15 : vector<4x1x1xf32> to vector<4x16x1xf32>
    %17 = arith.subf %13, %16 : vector<4x16x1xf32>
    %18 = math.exp %17 : vector<4x16x1xf32>
    %cst_12 = arith.constant dense<0.000000e+00> : vector<4x1xf32>
    %19 = vector.multi_reduction <add>, %18, %cst_12 [1] : vector<4x16x1xf32> to vector<4x1xf32>
    %20 = vector.shape_cast %19 : vector<4x1xf32> to vector<4x1x1xf32>
    %21 = vector.broadcast %20 : vector<4x1x1xf32> to vector<4x16x1xf32>
    %22 = arith.divf %18, %21 : vector<4x16x1xf32>
    %23 = vector.broadcast %22 : vector<4x16x1xf32> to vector<4x16x128xf32>
    %24 = arith.mulf %23, %0 : vector<4x16x128xf32>
    %cst_13 = arith.constant dense<0.000000e+00> : vector<4x128xf32>
    %25 = vector.multi_reduction <add>, %24, %cst_13 [1] : vector<4x16x128xf32> to vector<4x128xf32>
    %c0_14 = arith.constant 0 : index
    %c0_15 = arith.constant 0 : index
    %26 = vector.load %arg5[%c0_14, %c0_15] : memref<4x128xf32, #tpu.memory_space<vmem>>, vector<4x128xf32>
    tpu.vector_store %arg5[%c0_14, %c0_15], %25 {strides = array<i32>} : memref<4x128xf32, #tpu.memory_space<vmem>>, vector<4x128xf32>,
    return
  }
}

</mosaic_0001>

<llo_original>
// kernel: tpu_custom_call.1
$region0: #{tpu_custom_call.1}
  #allocation0 [shape = 'u32[]', space=smem, size = 0x4, offset = 0x4, fixed_abs, tag = 'smem constant byte address 0x4 - core index']
  #allocation1 [shape = 'u32[144,128]{1,0:T(1,128)}', space=vmem, size = 0x12000, scoped, tag = 'internal scratch']
  #allocation2 [shape = 'f32[1,1]{1,0:T(1,128)S(1)}', space=vmem, size = 0x200, scoped, tag = 'scoped memory for tpu_custom_call.1']
  %s0 = inlined_call_operand.hbm [shape: f32[4,16,128], index: 0, kind: input, shape index: {}]
  %s1 = inlined_call_operand.vmem [shape: f32[128,128], index: 1, kind: input, shape index: {}]
  %s2 = inlined_call_operand.vmem [shape: f32[1,128], index: 2, kind: input, shape index: {}]
  %s3 = inlined_call_operand.vmem [shape: f32[128,1], index: 3, kind: input, shape index: {}]
  %s4 = inlined_call_operand.<no memory space> [shape: f32[1,1], index: 4, kind: input, shape index: {}]
  %s5 = inlined_call_operand.hbm [shape: f32[4,128], index: 5, kind: output, shape index: {}]
  %s6 = sld [smem:[#allocation0]]
  $region34: #{tpu_custom_call.1} parent=0
    _
  %s8 = ssub.s32 1, %s6
  %s9 = scalar_select 0, %s8, %s6
  %v10 = vstv %s4
  %11 = vst [vmem:[#allocation2] sm:$0x1] %v10
  $region1: #{tpu_custom_call.1} parent=0
    #allocation3 [shape = 'u8[32768]{0}', space=vmem, size = 0x8000, scoped, tag = 'input window, operand 0, single buffered']
    #allocation4 [shape = 's32[1]{0}', space=sflag, size = 0x4, scoped, tag = 'scoped memory for tpu_custom_call.1']
    #allocation5 [shape = 's32[1]{0}', space=sflag, size = 0x4, scoped, tag = 'scoped memory for tpu_custom_call.1']
    #allocation6 [shape = 'u8[2048]{0}', space=vmem, size = 0x800, scoped, tag = 'output window, operand 0, single buffered']
    %12 = vsyncpa [#allocation4], 0
    %13 = vsyncpa [#allocation5], 0
    // Predicated region
    $region2: #{tpu_custom_call.1} parent=1 // pred_check
      _
    $region3: #{tpu_custom_call.1} parent=1 // pred_check_branch
      %15 = sbr.rel (0) target = $region5
    $region4: #{tpu_custom_call.1} parent=1 // pred_region
      %s17 = ssub.s32 1024, 1024
      %18 = vsyncadd [#allocation4], %s17
      %s19 = sshll.u32 [#allocation3], 4
      %s20 = int_to_ptr.vmem [resolvable:$true] %s19
      %25 = dma.hbm_to_vmem [thread:$0]  %s0, 1024, %s20, [#allocation4], 128, 128, 8
    $region5: #{tpu_custom_call.1} parent=1 // pred_fallthru
      _
    // Predicated region
    $region6: #{tpu_custom_call.1} parent=1 // pred_check
      _
    $region7: #{tpu_custom_call.1} parent=1 // pred_check_branch
      %27 = sbr.rel (0) target = $region9
    $region8: #{tpu_custom_call.1} parent=1 // pred_region
      _
    $region9: #{tpu_custom_call.1} parent=1 // pred_fallthru
      _
    // Predicated region
    $region10: #{tpu_custom_call.1} parent=1 // pred_check
      _
    $region11: #{tpu_custom_call.1} parent=1 // pred_check_branch
      %29 = sbr.rel (0) target = $region13
    $region12: #{tpu_custom_call.1} parent=1 // pred_region
      _
    $region13: #{tpu_custom_call.1} parent=1 // pred_fallthru
      _
    // Predicated region
    $region14: #{tpu_custom_call.1} parent=1 // pred_check
      _
    $region15: #{tpu_custom_call.1} parent=1 // pred_check_branch
      %31 = sbr.rel (0) target = $region17
    $region16: #{tpu_custom_call.1} parent=1 // pred_region
      _
    $region17: #{tpu_custom_call.1} parent=1 // pred_fallthru
      _
    // Predicated region
    $region18: #{tpu_custom_call.1} parent=1 // pred_check
      _
    $region19: #{tpu_custom_call.1} parent=1 // pred_check_branch
      %33 = sbr.rel (0) target = $region21
    $region20: #{tpu_custom_call.1} parent=1 // pred_region
      _
    $region21: #{tpu_custom_call.1} parent=1 // pred_fallthru
      _
    // Predicated region
    $region22: #{tpu_custom_call.1} parent=1 // pred_check
      _
    $region23: #{tpu_custom_call.1} parent=1 // pred_check_branch
      %35 = sbr.rel (0) target = $region25
    $region24: #{tpu_custom_call.1} parent=1 // pred_region
      %36 = dma.done [#allocation4], 1024
    $region25: #{tpu_custom_call.1} parent=1 // pred_fallthru
      _
    %v37 = vld [vmem:[#allocation3] sm:$0xff]
    %v38 = vld [vmem:[#allocation3 + $0x8] sm:$0xff]
    %v39 = vld [vmem:[#allocation3 + $0x10] sm:$0xff]
    %v40 = vld [vmem:[#allocation3 + $0x18] sm:$0xff]
    %v41 = vld [vmem:[#allocation3 + $0x20] sm:$0xff]
    %v42 = vld [vmem:[#allocation3 + $0x28] sm:$0xff]
    %v43 = vld [vmem:[#allocation3 + $0x30] sm:$0xff]
    %v44 = vld [vmem:[#allocation3 + $0x38] sm:$0xff]
    %v45 = vld [vmem:[%s1] sm:$0xff]
    %v46 = vld [vmem:[%s1 + $0x8] sm:$0xff]
    %v47 = vld [vmem:[%s1 + $0x10] sm:$0xff]
    %v48 = vld [vmem:[%s1 + $0x18] sm:$0xff]
    %v49 = vld [vmem:[%s1 + $0x20] sm:$0xff]
    %v50 = vld [vmem:[%s1 + $0x28] sm:$0xff]
    %v51 = vld [vmem:[%s1 + $0x30] sm:$0xff]
    %v52 = vld [vmem:[%s1 + $0x38] sm:$0xff]
    %v53 = vld [vmem:[%s1 + $0x40] sm:$0xff]
    %v54 = vld [vmem:[%s1 + $0x48] sm:$0xff]
    %v55 = vld [vmem:[%s1 + $0x50] sm:$0xff]
    %v56 = vld [vmem:[%s1 + $0x58] sm:$0xff]
    %v57 = vld [vmem:[%s1 + $0x60] sm:$0xff]
    %v58 = vld [vmem:[%s1 + $0x68] sm:$0xff]
    %v59 = vld [vmem:[%s1 + $0x70] sm:$0xff]
    %v60 = vld [vmem:[%s1 + $0x78] sm:$0xff]
    %v61 = vld [vmem:[%s2] sm:$0x1]
    %v63 = vlaneseq
    %v64 = vshrl.u32 %v63, 7
    %v65 = vsub.s32 0, %v64
    %v66 = vrot.slane %v61, %v65
    %68 = vmatprep.subr.mxu0 0.0
    %69 = vmatpush1.msra.mxu0 %v45
    %70 = vmatprep.subr.mxu0 0.0
    %71 = vmatpush1.msra.mxu0 %v46
    %72 = vmatprep.subr.mxu0 0.0
    %73 = vmatpush1.msra.mxu0 %v47
    %74 = vmatprep.subr.mxu0 0.0
    %75 = vmatpush1.msra.mxu0 %v48
    %76 = vmatprep.subr.mxu0 0.0
    %77 = vmatpush1.msra.mxu0 %v49
    %78 = vmatprep.subr.mxu0 0.0
    %79 = vmatpush1.msra.mxu0 %v50
    %80 = vmatprep.subr.mxu0 0.0
    %81 = vmatpush1.msra.mxu0 %v51
    %82 = vmatprep.subr.mxu0 0.0
    %83 = vmatpush1.msra.mxu0 %v52
    %84 = vmatprep.subr.mxu0 0.0
    %85 = vmatpush1.msra.mxu0 %v53
    %86 = vmatprep.subr.mxu0 0.0
    %87 = vmatpush1.msra.mxu0 %v54
    %88 = vmatprep.subr.mxu0 0.0
    %89 = vmatpush1.msra.mxu0 %v55
    %90 = vmatprep.subr.mxu0 0.0
    %91 = vmatpush1.msra.mxu0 %v56
    %92 = vmatprep.subr.mxu0 0.0
    %93 = vmatpush1.msra.mxu0 %v57
    %94 = vmatprep.subr.mxu0 0.0
    %95 = vmatpush1.msra.mxu0 %v58
    %96 = vmatprep.subr.mxu0 0.0
    %97 = vmatpush1.msra.mxu0 %v59
    %98 = vmatprep.subr.mxu0 0.0
    %99 = vmatpush1.msra.mxu0 %v60
    %100 = vmatprep.subr.mxu0 0.0
    %101 = vmatpush1.msra.mxu0 0.0
    %102 = vmatprep.subr.mxu0 0.0
    %103 = vmatpush1.msra.mxu0 0.0
    %104 = vmatprep.subr.mxu0 0.0
    %105 = vmatpush1.msra.mxu0 0.0
    %106 = vmatprep.subr.mxu0 0.0
    %107 = vmatpush1.msra.mxu0 0.0
    %108 = vmatprep.subr.mxu0 0.0
    %109 = vmatpush1.msra.mxu0 0.0
    %110 = vmatprep.subr.mxu0 0.0
    %111 = vmatpush1.msra.mxu0 0.0
    %112 = vmatprep.subr.mxu0 0.0
    %113 = vmatpush1.msra.mxu0 0.0
    %114 = vmatprep.subr.mxu0 0.0
    %115 = vmatpush1.msra.mxu0 0.0
    %116 = vmatprep.subr.mxu0 0.0
    %117 = vmatpush1.msra.mxu0 0.0
    %118 = vmatprep.subr.mxu0 0.0
    %119 = vmatpush1.msra.mxu0 0.0
    %120 = vmatprep.subr.mxu0 0.0
    %121 = vmatpush1.msra.mxu0 0.0
    %122 = vmatprep.subr.mxu0 0.0
    %123 = vmatpush1.msra.mxu0 0.0
    %124 = vmatprep.subr.mxu0 0.0
    %125 = vmatpush1.msra.mxu0 0.0
    %126 = vmatprep.subr.mxu0 0.0
    %127 = vmatpush1.msra.mxu0 0.0
    %128 = vmatprep.subr.mxu0 0.0
    %129 = vmatpush1.msra.mxu0 0.0
    %130 = vmatprep.subr.mxu0 0.0
    %131 = vmatpush1.msra.mxu0 0.0
    %132 = vmatprep.mubr.f32.mxu0 0.0
    %133 = vmatmul.mubr.f32.gmra.mrb[0].mxu0 %v37
    %v134 = vpop.f32.mrb[0].mxu0
    %v135 = vadd.f32 %v66, %v134
    %v136 = vpop.f32.mrb[0].mxu0
    %137 = vmatprep.mubr.f32.mxu0 0.0
    %138 = vmatmul.mubr.f32.gmra.mrb[0].mxu0 %v38
    %v139 = vpop.f32.mrb[0].mxu0
    %v140 = vadd.f32 %v66, %v139
    %v141 = vpop.f32.mrb[0].mxu0
    %142 = vmatprep.mubr.f32.mxu0 0.0
    %143 = vmatmul.mubr.f32.gmra.mrb[0].mxu0 %v39
    %v144 = vpop.f32.mrb[0].mxu0
    %v145 = vadd.f32 %v66, %v144
    %v146 = vpop.f32.mrb[0].mxu0
    %147 = vmatprep.mubr.f32.mxu0 0.0
    %148 = vmatmul.mubr.f32.gmra.mrb[0].mxu0 %v40
    %v149 = vpop.f32.mrb[0].mxu0
    %v150 = vadd.f32 %v66, %v149
    %v151 = vpop.f32.mrb[0].mxu0
    %152 = vmatprep.mubr.f32.mxu0 0.0
    %153 = vmatmul.mubr.f32.gmra.mrb[0].mxu0 %v41
    %v154 = vpop.f32.mrb[0].mxu0
    %v155 = vadd.f32 %v66, %v154
    %v156 = vpop.f32.mrb[0].mxu0
    %157 = vmatprep.mubr.f32.mxu0 0.0
    %158 = vmatmul.mubr.f32.gmra.mrb[0].mxu0 %v42
    %v159 = vpop.f32.mrb[0].mxu0
    %v160 = vadd.f32 %v66, %v159
    %v161 = vpop.f32.mrb[0].mxu0
    %162 = vmatprep.mubr.f32.mxu0 0.0
    %163 = vmatmul.mubr.f32.gmra.mrb[0].mxu0 %v43
    %v164 = vpop.f32.mrb[0].mxu0
    %v165 = vadd.f32 %v66, %v164
    %v166 = vpop.f32.mrb[0].mxu0
    %167 = vmatprep.mubr.f32.mxu0 0.0
    %168 = vmatmul.mubr.f32.gmra.mrb[0].mxu0 %v44
    %v169 = vpop.f32.mrb[0].mxu0
    %v170 = vadd.f32 %v66, %v169
    %v171 = vpop.f32.mrb[0].mxu0
    %172 = vdwg.mxu0
    %v173 = vtanh.pop %v135
    %v174 = vtanh.pop %v140
    %v175 = vtanh.pop %v145
    %v176 = vtanh.pop %v150
    %v177 = vtanh.pop %v155
    %v178 = vtanh.pop %v160
    %v179 = vtanh.pop %v165
    %v180 = vtanh.pop %v170
    %v181 = vld [vmem:[%s3] sm:$0xff]
    %v182 = vld [vmem:[%s3 + $0x8] sm:$0xff]
    %v183 = vld [vmem:[%s3 + $0x10] sm:$0xff]
    %v184 = vld [vmem:[%s3 + $0x18] sm:$0xff]
    %v185 = vld [vmem:[%s3 + $0x20] sm:$0xff]
    %v186 = vld [vmem:[%s3 + $0x28] sm:$0xff]
    %v187 = vld [vmem:[%s3 + $0x30] sm:$0xff]
    %v188 = vld [vmem:[%s3 + $0x38] sm:$0xff]
    %v189 = vld [vmem:[%s3 + $0x40] sm:$0xff]
    %v190 = vld [vmem:[%s3 + $0x48] sm:$0xff]
    %v191 = vld [vmem:[%s3 + $0x50] sm:$0xff]
    %v192 = vld [vmem:[%s3 + $0x58] sm:$0xff]
    %v193 = vld [vmem:[%s3 + $0x60] sm:$0xff]
    %v194 = vld [vmem:[%s3 + $0x68] sm:$0xff]
    %v195 = vld [vmem:[%s3 + $0x70] sm:$0xff]
    %v196 = vld [vmem:[%s3 + $0x78] sm:$0xff]
    %v197 = vld [vmem:[#allocation2] sm:$0x1]
    %v199 = vlaneseq
    %v200 = vshrl.u32 %v199, 7
    %v201 = vsub.s32 0, %v200
    %v202 = vrot.slane %v197, %v201
    %204 = vmatprep.subr.mxu0 0.0
    %205 = vmatpush1.msra.mxu0 %v181
    %206 = vmatprep.subr.mxu0 0.0
    %207 = vmatpush1.msra.mxu0 %v182
    %208 = vmatprep.subr.mxu0 0.0
    %209 = vmatpush1.msra.mxu0 %v183
    %210 = vmatprep.subr.mxu0 0.0
    %211 = vmatpush1.msra.mxu0 %v184
    %212 = vmatprep.subr.mxu0 0.0
    %213 = vmatpush1.msra.mxu0 %v185
    %214 = vmatprep.subr.mxu0 0.0
    %215 = vmatpush1.msra.mxu0 %v186
    %216 = vmatprep.subr.mxu0 0.0
    %217 = vmatpush1.msra.mxu0 %v187
    %218 = vmatprep.subr.mxu0 0.0
    %219 = vmatpush1.msra.mxu0 %v188
    %220 = vmatprep.subr.mxu0 0.0
    %221 = vmatpush1.msra.mxu0 %v189
    %222 = vmatprep.subr.mxu0 0.0
    %223 = vmatpush1.msra.mxu0 %v190
    %224 = vmatprep.subr.mxu0 0.0
    %225 = vmatpush1.msra.mxu0 %v191
    %226 = vmatprep.subr.mxu0 0.0
    %227 = vmatpush1.msra.mxu0 %v192
    %228 = vmatprep.subr.mxu0 0.0
    %229 = vmatpush1.msra.mxu0 %v193
    %230 = vmatprep.subr.mxu0 0.0
    %231 = vmatpush1.msra.mxu0 %v194
    %232 = vmatprep.subr.mxu0 0.0
    %233 = vmatpush1.msra.mxu0 %v195
    %234 = vmatprep.subr.mxu0 0.0
    %235 = vmatpush1.msra.mxu0 %v196
    %236 = vmatprep.subr.mxu0 0.0
    %237 = vmatpush1.msra.mxu0 0.0
    %238 = vmatprep.subr.mxu0 0.0
    %239 = vmatpush1.msra.mxu0 0.0
    %240 = vmatprep.subr.mxu0 0.0
    %241 = vmatpush1.msra.mxu0 0.0
    %242 = vmatprep.subr.mxu0 0.0
    %243 = vmatpush1.msra.mxu0 0.0
    %244 = vmatprep.subr.mxu0 0.0
    %245 = vmatpush1.msra.mxu0 0.0
    %246 = vmatprep.subr.mxu0 0.0
    %247 = vmatpush1.msra.mxu0 0.0
    %248 = vmatprep.subr.mxu0 0.0
    %249 = vmatpush1.msra.mxu0 0.0
    %250 = vmatprep.subr.mxu0 0.0
    %251 = vmatpush1.msra.mxu0 0.0
    %252 = vmatprep.subr.mxu0 0.0
    %253 = vmatpush1.msra.mxu0 0.0
    %254 = vmatprep.subr.mxu0 0.0
    %255 = vmatpush1.msra.mxu0 0.0
    %256 = vmatprep.subr.mxu0 0.0
    %257 = vmatpush1.msra.mxu0 0.0
    %258 = vmatprep.subr.mxu0 0.0
    %259 = vmatpush1.msra.mxu0 0.0
    %260 = vmatprep.subr.mxu0 0.0
    %261 = vmatpush1.msra.mxu0 0.0
    %262 = vmatprep.subr.mxu0 0.0
    %263 = vmatpush1.msra.mxu0 0.0
    %264 = vmatprep.subr.mxu0 0.0
    %265 = vmatpush1.msra.mxu0 0.0
    %266 = vmatprep.subr.mxu0 0.0
    %267 = vmatpush1.msra.mxu0 0.0
    %268 = vmatprep.mubr.f32.mxu0 0.0
    %269 = vmatmul.mubr.f32.gmra.mrb[0].mxu0 %v173
    %v270 = vpop.f32.mrb[0].mxu0
    %v271 = vadd.f32 %v202, %v270
    %v272 = vpop.f32.mrb[0].mxu0
    %273 = vmatprep.mubr.f32.mxu0 0.0
    %274 = vmatmul.mubr.f32.gmra.mrb[0].mxu0 %v174
    %v275 = vpop.f32.mrb[0].mxu0
    %v276 = vadd.f32 %v202, %v275
    %v277 = vpop.f32.mrb[0].mxu0
    %278 = vmatprep.mubr.f32.mxu0 0.0
    %279 = vmatmul.mubr.f32.gmra.mrb[0].mxu0 %v175
    %v280 = vpop.f32.mrb[0].mxu0
    %v281 = vadd.f32 %v202, %v280
    %v282 = vpop.f32.mrb[0].mxu0
    %283 = vmatprep.mubr.f32.mxu0 0.0
    %284 = vmatmul.mubr.f32.gmra.mrb[0].mxu0 %v176
    %v285 = vpop.f32.mrb[0].mxu0
    %v286 = vadd.f32 %v202, %v285
    %v287 = vpop.f32.mrb[0].mxu0
    %288 = vmatprep.mubr.f32.mxu0 0.0
    %289 = vmatmul.mubr.f32.gmra.mrb[0].mxu0 %v177
    %v290 = vpop.f32.mrb[0].mxu0
    %v291 = vadd.f32 %v202, %v290
    %v292 = vpop.f32.mrb[0].mxu0
    %293 = vmatprep.mubr.f32.mxu0 0.0
    %294 = vmatmul.mubr.f32.gmra.mrb[0].mxu0 %v178
    %v295 = vpop.f32.mrb[0].mxu0
    %v296 = vadd.f32 %v202, %v295
    %v297 = vpop.f32.mrb[0].mxu0
    %298 = vmatprep.mubr.f32.mxu0 0.0
    %299 = vmatmul.mubr.f32.gmra.mrb[0].mxu0 %v179
    %v300 = vpop.f32.mrb[0].mxu0
    %v301 = vadd.f32 %v202, %v300
    %v302 = vpop.f32.mrb[0].mxu0
    %303 = vmatprep.mubr.f32.mxu0 0.0
    %304 = vmatmul.mubr.f32.gmra.mrb[0].mxu0 %v180
    %v305 = vpop.f32.mrb[0].mxu0
    %v306 = vadd.f32 %v202, %v305
    %v307 = vpop.f32.mrb[0].mxu0
    %308 = vdwg.mxu0
    %vm309 = vcmask 7168
    %v310 = vsel %vm309, %v271, -inf
    %v311 = vsel %vm309, %v276, -inf
    %v312 = vmax.f32 %v310, %v311
    %v313 = vrot.slane %v312, 4
    %v314 = vmax.f32 %v312, %v313
    %v315 = vrot.slane %v314, 2
    %v316 = vmax.f32 %v314, %v315
    %v317 = vrot.slane %v316, 1
    %v318 = vmax.f32 %v316, %v317
    %v319 = vsel %vm309, %v281, -inf
    %v320 = vsel %vm309, %v286, -inf
    %v321 = vmax.f32 %v319, %v320
    %v322 = vrot.slane %v321, 4
    %v323 = vmax.f32 %v321, %v322
    %v324 = vrot.slane %v323, 2
    %v325 = vmax.f32 %v323, %v324
    %v326 = vrot.slane %v325, 1
    %v327 = vmax.f32 %v325, %v326
    %v328 = vsel %vm309, %v291, -inf
    %v329 = vsel %vm309, %v296, -inf
    %v330 = vmax.f32 %v328, %v329
    %v331 = vrot.slane %v330, 4
    %v332 = vmax.f32 %v330, %v331
    %v333 = vrot.slane %v332, 2
    %v334 = vmax.f32 %v332, %v333
    %v335 = vrot.slane %v334, 1
    %v336 = vmax.f32 %v334, %v335
    %v337 = vsel %vm309, %v301, -inf
    %v338 = vsel %vm309, %v306, -inf
    %v339 = vmax.f32 %v337, %v338
    %v340 = vrot.slane %v339, 4
    %v341 = vmax.f32 %v339, %v340
    %v342 = vrot.slane %v341, 2
    %v343 = vmax.f32 %v341, %v342
    %v344 = vrot.slane %v343, 1
    %v345 = vmax.f32 %v343, %v344
    %v346 = vsub.f32 %v271, %v318
    %v347 = vsub.f32 %v276, %v318
    %v348 = vsub.f32 %v281, %v327
    %v349 = vsub.f32 %v286, %v327
    %v350 = vsub.f32 %v291, %v336
    %v351 = vsub.f32 %v296, %v336
    %v352 = vsub.f32 %v301, %v345
    %v353 = vsub.f32 %v306, %v345
    %v354 = vmul.f32 %v346, 1.442695
    %v355 = vpow.pop %v354
    %v356 = vmul.f32 %v347, 1.442695
    %v357 = vpow.pop %v356
    %v358 = vmul.f32 %v348, 1.442695
    %v359 = vpow.pop %v358
    %v360 = vmul.f32 %v349, 1.442695
    %v361 = vpow.pop %v360
    %v362 = vmul.f32 %v350, 1.442695
    %v363 = vpow.pop %v362
    %v364 = vmul.f32 %v351, 1.442695
    %v365 = vpow.pop %v364
    %v366 = vmul.f32 %v352, 1.442695
    %v367 = vpow.pop %v366
    %v368 = vmul.f32 %v353, 1.442695
    %v369 = vpow.pop %v368
    %v370 = vsel %vm309, %v355, 0.0
    %v371 = vsel %vm309, %v357, 0.0
    %v372 = vadd.f32 %v370, %v371
    %v373 = vrot.slane %v372, 4
    %v374 = vadd.f32 %v372, %v373
    %v375 = vrot.slane %v374, 2
    %v376 = vadd.f32 %v374, %v375
    %v377 = vrot.slane %v376, 1
    %v378 = vadd.f32 %v376, %v377
    %v379 = vsel %vm309, %v359, 0.0
    %v380 = vsel %vm309, %v361, 0.0
    %v381 = vadd.f32 %v379, %v380
    %v382 = vrot.slane %v381, 4
    %v383 = vadd.f32 %v381, %v382
    %v384 = vrot.slane %v383, 2
    %v385 = vadd.f32 %v383, %v384
    %v386 = vrot.slane %v385, 1
    %v387 = vadd.f32 %v385, %v386
    %v388 = vsel %vm309, %v363, 0.0
    %v389 = vsel %vm309, %v365, 0.0
    %v390 = vadd.f32 %v388, %v389
    %v391 = vrot.slane %v390, 4
    %v392 = vadd.f32 %v390, %v391
    %v393 = vrot.slane %v392, 2
    %v394 = vadd.f32 %v392, %v393
    %v395 = vrot.slane %v394, 1
    %v396 = vadd.f32 %v394, %v395
    %v397 = vsel %vm309, %v367, 0.0
    %v398 = vsel %vm309, %v369, 0.0
    %v399 = vadd.f32 %v397, %v398
    %v400 = vrot.slane %v399, 4
    %v401 = vadd.f32 %v399, %v400
    %v402 = vrot.slane %v401, 2
    %v403 = vadd.f32 %v401, %v402
    %v404 = vrot.slane %v403, 1
    %v405 = vadd.f32 %v403, %v404
    %v406 = vrcp.pop %v378
    %v407 = vmul.f32 %v355, %v406
    %v408 = vmul.f32 %v357, %v406
    %v409 = vrcp.pop %v387
    %v410 = vmul.f32 %v359, %v409
    %v411 = vmul.f32 %v361, %v409
    %v412 = vrcp.pop %v396
    %v413 = vmul.f32 %v363, %v412
    %v414 = vmul.f32 %v365, %v412
    %v415 = vrcp.pop %v405
    %v416 = vmul.f32 %v367, %v415
    %v417 = vmul.f32 %v369, %v415
    %419 = vset.pattern.permute.xlu0 0
    %420 = vperm.xlu0 %419, %v407
    %v421 = vpop.permute.xlu0 %420
    %424 = vset.pattern.permute.xlu0 0
    %425 = vperm.xlu0 %424, %v408
    %v426 = vpop.permute.xlu0 %425
    %429 = vset.pattern.permute.xlu0 0
    %430 = vperm.xlu0 %429, %v410
    %v431 = vpop.permute.xlu0 %430
    %434 = vset.pattern.permute.xlu0 0
    %435 = vperm.xlu0 %434, %v411
    %v436 = vpop.permute.xlu0 %435
    %439 = vset.pattern.permute.xlu0 0
    %440 = vperm.xlu0 %439, %v413
    %v441 = vpop.permute.xlu0 %440
    %444 = vset.pattern.permute.xlu0 0
    %445 = vperm.xlu0 %444, %v414
    %v446 = vpop.permute.xlu0 %445
    %449 = vset.pattern.permute.xlu0 0
    %450 = vperm.xlu0 %449, %v416
    %v451 = vpop.permute.xlu0 %450
    %454 = vset.pattern.permute.xlu0 0
    %455 = vperm.xlu0 %454, %v417
    %v456 = vpop.permute.xlu0 %455
    %v458 = vmul.f32 %v421, %v37
    %v459 = vmul.f32 %v426, %v38
    %v460 = vmul.f32 %v431, %v39
    %v461 = vmul.f32 %v436, %v40
    %v462 = vmul.f32 %v441, %v41
    %v463 = vmul.f32 %v446, %v42
    %v464 = vmul.f32 %v451, %v43
    %v465 = vmul.f32 %v456, %v44
    %v466 = vadd.f32 %v458, %v459
    %v467 = vrot.slane %v466, 4
    %v468 = vadd.f32 %v466, %v467
    %v469 = vrot.slane %v468, 2
    %v470 = vadd.f32 %v468, %v469
    %v471 = vrot.slane %v470, 1
    %v472 = vadd.f32 %v470, %v471
    %v473 = vadd.f32 %v460, %v461
    %v474 = vrot.slane %v473, 4
    %v475 = vadd.f32 %v473, %v474
    %v476 = vrot.slane %v475, 2
    %v477 = vadd.f32 %v475, %v476
    %v478 = vrot.slane %v477, 1
    %v479 = vadd.f32 %v477, %v478
    %v480 = vadd.f32 %v462, %v463
    %v481 = vrot.slane %v480, 4
    %v482 = vadd.f32 %v480, %v481
    %v483 = vrot.slane %v482, 2
    %v484 = vadd.f32 %v482, %v483
    %v485 = vrot.slane %v484, 1
    %v486 = vadd.f32 %v484, %v485
    %v487 = vadd.f32 %v464, %v465
    %v488 = vrot.slane %v487, 4
    %v489 = vadd.f32 %v487, %v488
    %v490 = vrot.slane %v489, 2
    %v491 = vadd.f32 %v489, %v490
    %v492 = vrot.slane %v491, 1
    %v493 = vadd.f32 %v491, %v492
    %vm498 = vcmask 1041409
    %v499 = vsel %vm498, %v479, %v472
    %vm500 = vcmask 1042434
    %v501 = vsel %vm500, %v486, %v499
    %vm502 = vcmask 1043459
    %v503 = vsel %vm502, %v493, %v501
    %505 = vst [vmem:[#allocation6] sm:$0xf] %v503
    // Predicated region
    $region26: #{tpu_custom_call.1} parent=1 // pred_check
      _
    $region27: #{tpu_custom_call.1} parent=1 // pred_check_branch
      %507 = sbr.rel (0) target = $region29
    $region28: #{tpu_custom_call.1} parent=1 // pred_region
      %s509 = ssub.s32 64, 64
      %510 = vsyncadd [#allocation5], %s509
      %s512 = sshll.u32 [#allocation6], 4
      %s513 = int_to_ptr.vmem [resolvable:$true] %s512
      %515 = dma.vmem_to_hbm [thread:$0]  %s513, 64, %s5, [#allocation5]
    $region29: #{tpu_custom_call.1} parent=1 // pred_fallthru
      _
    // Predicated region
    $region30: #{tpu_custom_call.1} parent=1 // pred_check
      _
    $region31: #{tpu_custom_call.1} parent=1 // pred_check_branch
      %517 = sbr.rel (0) target = $region33
    $region32: #{tpu_custom_call.1} parent=1 // pred_region
      %518 = dma.done [#allocation5], 64
    $region33: #{tpu_custom_call.1} parent=1 // pred_fallthru
      _
    %519 = vsyncpa [#allocation4], 1
    %520 = vsyncpa [#allocation5], 1

</llo_original>
